<compile_context>
chip_gen: v6e
topology: v6e:2x2x1
jax: 0.10.0
libtpu: 0.0.40
codegen_flags: <defaults>
</compile_context>

<pallas_src>
import jax
import jax.numpy as jnp
from jax.experimental import pallas as pl
from jax.experimental.pallas import tpu as pltpu

_NEG_SLOPE = 0.01  # torch.nn.LeakyReLU default negative_slope


def _mlp_kernel(x_ref, w1_ref, b1_ref, w2_ref, b2_ref, o_ref):
    # fc1 on the MXU: bf16 (default) or f32 operands, f32 accumulation.
    h = jnp.dot(x_ref[...].astype(w1_ref.dtype), w1_ref[...],
                preferred_element_type=jnp.float32)
    h = h + b1_ref[...]                       # bias in f32 (broadcast over rows)
    h = jnp.maximum(h, _NEG_SLOPE * h)        # LeakyReLU: mul+max on the VPU
    # fc2 on the MXU.
    out = jnp.dot(h.astype(w2_ref.dtype), w2_ref[...],
                  preferred_element_type=jnp.float32)
    out = out + b2_ref[...]
    # sigmoid = 1 / (1 + exp(-out)); exp and approx reciprocal both issue on the EUP.
    o_ref[...] = pl.reciprocal(1.0 + jnp.exp(-out), approx=True).astype(o_ref.dtype)
    # Note: for very large H (e.g. >= 4096) the fc1 hidden dim should be chunked
    # inside the kernel (loop over H tiles accumulating into a (tb, C) f32
    # accumulator) to bound the f32 intermediate and keep weights resident
    # within v7x's 64 MiB VMEM. Not needed at typical MLP sizes.


def _round_up(n, m):
    return (n + m - 1) // m * m


def prepare_mlp_params(w1, b1, w2, b2, *, matmul_dtype=jnp.bfloat16):
    """One-time weight preparation (hoisted out of the per-call path).

    w1: (I, H); b1: (H,); w2: (H, C); b2: (C,) -- stored (in, out), i.e.
    transposed vs torch.nn.Linear, so the kernel computes plain x @ W + b.

    Casts weights to the MXU dtype and zero-pads the hidden dim to a lane
    multiple. Padding is exact: padded hidden columns get b1 = 0 ->
    leaky_relu(0) = 0, and the matching zero rows of w2 contribute nothing.
    """
    I, H = w1.shape
    C = w2.shape[1]
    # 128 keeps the hidden lanes dense; use 256 if a compute-bound layer should
    # fully feed the 2x256^2 MXU on v6e/v7x.
    H_p = _round_up(H, 128)
    w1p = jnp.zeros((I, H_p), matmul_dtype).at[:, :H].set(w1.astype(matmul_dtype))
    b1p = jnp.zeros((1, H_p), jnp.float32).at[0, :H].set(
        jnp.reshape(b1, (-1,)).astype(jnp.float32))
    w2p = jnp.zeros((H_p, C), matmul_dtype).at[:H, :].set(w2.astype(matmul_dtype))
    b2p = jnp.reshape(b2, (1, C)).astype(jnp.float32)
    return {"w1": w1p, "b1": b1p, "w2": w2p, "b2": b2p}


def mlp_forward(x, params, *, block_b=512):
    """x: (B, I), params from prepare_mlp_params -> (B, C) float32."""
    w1p, b1p, w2p, b2p = params["w1"], params["b1"], params["w2"], params["b2"]
    B, I = x.shape
    I_w, H_p = w1p.shape
    C = w2p.shape[1]
    assert I == I_w, (I, I_w)

    # Batch tile: a multiple of 8 sublanes, as large as block_b allows (fewer
    # grid steps -> better HBM streaming), but split into >= 2 tiles whenever B
    # allows so the "parallel" axis can shard across both v7x TensorCores
    # (extra grid step is ~0.35 us overhead on single-TC v5e/v6e).
    tb = min(block_b, _round_up(B, 8))
    if B > 8 and pl.cdiv(B, tb) < 2:
        tb = _round_up(pl.cdiv(B, 2), 8)
    grid = (pl.cdiv(B, tb),)   # ragged last tile -> masked reads/writes

    # VMEM budget: double-buffered x/out tiles, single-buffered resident weights
    # (Buffered(1)), biases, and the (tb, H_p) f32 hidden intermediate.
    # 1.5x headroom, floor 16 MiB, capped at 48 MiB (headroom inside v7x's
    # 64 MiB physical VMEM per TensorCore).
    w_bytes = jnp.dtype(w1p.dtype).itemsize
    est = (2 * tb * I * x.dtype.itemsize        # x tile (double-buffered)
           + 2 * tb * C * 4                     # out tile (double-buffered)
           + (I * H_p + H_p * C) * w_bytes      # resident weights (1 buffer)
           + (H_p + C) * 4                      # resident biases
           + tb * H_p * 4)                      # f32 hidden intermediate
    vmem_limit = int(min(max(int(1.5 * est), 16 * 1024 * 1024),
                         48 * 1024 * 1024))

    cost = pl.CostEstimate(
        flops=2 * B * (I * H_p + H_p * C),
        transcendentals=2 * B * C,              # exp + reciprocal per output elem
        bytes_accessed=(x.size * x.dtype.itemsize
                        + (w1p.size + w2p.size) * w_bytes
                        + (b1p.size + b2p.size) * 4
                        + B * C * 4),
    )

    return pl.pallas_call(
        _mlp_kernel,
        out_shape=jax.ShapeDtypeStruct((B, C), jnp.float32),
        grid_spec=pltpu.PrefetchScalarGridSpec(
            num_scalar_prefetch=0,
            grid=grid,
            in_specs=[
                # x: batch-tiled, software-pipelined (last dim = full array dim).
                pl.BlockSpec((tb, I), lambda i: (i, 0)),
                # Weights/biases: constant index_map -> resident in VMEM;
                # Buffered(1) removes the useless second pipeline buffer.
                pl.BlockSpec((I, H_p), lambda i: (0, 0),
                             pipeline_mode=pl.Buffered(1)),
                pl.BlockSpec((1, H_p), lambda i: (0, 0),
                             pipeline_mode=pl.Buffered(1)),
                pl.BlockSpec((H_p, C), lambda i: (0, 0),
                             pipeline_mode=pl.Buffered(1)),
                pl.BlockSpec((1, C), lambda i: (0, 0),
                             pipeline_mode=pl.Buffered(1)),
            ],
            # Unpadded output block (last dim = full array dim); no post-slice.
            out_specs=pl.BlockSpec((tb, C), lambda i: (i, 0)),
        ),
        compiler_params=pltpu.CompilerParams(
            dimension_semantics=("parallel",),   # megacore sharding on v7x
            vmem_limit_bytes=vmem_limit,
        ),
        cost_estimate=cost,
    )(x, w1p, b1p, w2p, b2p)


if __name__ == "__main__":
    # Small shapes consistent with MLP.forward: input_x is (batch, i_size).
    B, I, H, C = 8, 32, 64, 8

    key = jax.random.PRNGKey(0)
    kx, k1, k2, k3, k4, kx2 = jax.random.split(key, 6)

    # Deterministic init mimicking torch.nn.Linear (U(-1/sqrt(fan_in), +)).
    bound1 = 1.0 / jnp.sqrt(jnp.float32(I))
    bound2 = 1.0 / jnp.sqrt(jnp.float32(H))
    x = jax.random.normal(kx, (B, I), jnp.float32)
    w1 = jax.random.uniform(k1, (I, H), jnp.float32, -bound1, bound1)
    b1 = jax.random.uniform(k2, (H,), jnp.float32, -bound1, bound1)
    w2 = jax.random.uniform(k3, (H, C), jnp.float32, -bound2, bound2)
    b2 = jax.random.uniform(k4, (C,), jnp.float32, -bound2, bound2)

    # Pure-JAX reference of the same math.
    h_ref = x @ w1 + b1
    h_ref = jnp.where(h_ref > 0, h_ref, _NEG_SLOPE * h_ref)
    ref = jax.nn.sigmoid(h_ref @ w2 + b2)

    # Default path: bf16 MXU operands (native on v5e/v6e/v7x), f32 accumulation
    # and epilogue. Accuracy contract: ~3e-2 vs the exact f32 torch reference.
    params_bf16 = prepare_mlp_params(w1, b1, w2, b2)       # one-time prep
    out = jax.block_until_ready(mlp_forward(x, params_bf16))
    assert out.shape == (B, C)
    assert jnp.allclose(out, ref, atol=3e-2, rtol=3e-2), float(
        jnp.max(jnp.abs(out - ref)))

    # f32 MXU path (emulated on the MXU; for tighter parity checks).
    # Residual ~1e-3 error comes from the approx-reciprocal sigmoid.
    params_f32 = prepare_mlp_params(w1, b1, w2, b2, matmul_dtype=jnp.float32)
    out_f32 = jax.block_until_ready(mlp_forward(x, params_f32))
    assert jnp.allclose(out_f32, ref, atol=5e-3, rtol=5e-3), float(
        jnp.max(jnp.abs(out_f32 - ref)))

    # Ragged, multi-tile batch: exercises grid = cdiv(B, tb), the masked last
    # tile, and the >=2-tile split that feeds both v7x TensorCores.
    B2 = 19
    x2 = jax.random.normal(kx2, (B2, I), jnp.float32)
    out2 = jax.block_until_ready(mlp_forward(x2, params_f32))
    h2 = x2 @ w1 + b1
    h2 = jnp.where(h2 > 0, h2, _NEG_SLOPE * h2)
    ref2 = jax.nn.sigmoid(h2 @ w2 + b2)
    assert out2.shape == (B2, C)
    assert jnp.allclose(out2, ref2, atol=5e-3, rtol=5e-3), float(
        jnp.max(jnp.abs(out2 - ref2)))

    print("KERNEL_OK")
</pallas_src>

<mosaic_0001>
module attributes {stable_mosaic.version = 11 : i64} {
  func.func @_mlp_kernel(%arg0: i32, %arg1: memref<8x32xf32, #tpu.memory_space<vmem>>, %arg2: memref<32x128xbf16, #tpu.memory_space<vmem>>, %arg3: memref<1x128xf32, #tpu.memory_space<vmem>>, %arg4: memref<128x8xbf16, #tpu.memory_space<vmem>>, %arg5: memref<1x8xf32, #tpu.memory_space<vmem>>, %arg6: memref<8x8xf32, #tpu.memory_space<vmem>>) attributes {dimension_semantics = [#tpu.dimension_semantics<parallel>], iteration_bounds = array<i64: 1>, scalar_prefetch = 0 : i64, scratch_operands = 0 : i64, tpu.core_type = #tpu.core_type<tc>, window_params = [{transform_indices = @transform_0, window_bounds = array<i64: 8, 32>}, {pipeline_mode = #tpu.pipeline_mode<synchronous>, transform_indices = @transform_1, window_bounds = array<i64: 32, 128>}, {pipeline_mode = #tpu.pipeline_mode<synchronous>, transform_indices = @transform_2, window_bounds = array<i64: 1, 128>}, {pipeline_mode = #tpu.pipeline_mode<synchronous>, transform_indices = @transform_3, window_bounds = array<i64: 128, 8>}, {pipeline_mode = #tpu.pipeline_mode<synchronous>, transform_indices = @transform_4, window_bounds = array<i64: 1, 8>}, {transform_indices = @transform_5, window_bounds = array<i64: 8, 8>}]} {
    %c0 = arith.constant 0 : index
    %c0_0 = arith.constant 0 : index
    %0 = vector.load %arg1[%c0, %c0_0] : memref<8x32xf32, #tpu.memory_space<vmem>>, vector<8x32xf32>
    %1 = arith.truncf %0 : vector<8x32xf32> to vector<8x32xbf16>
    %c0_1 = arith.constant 0 : index
    %c0_2 = arith.constant 0 : index
    %2 = vector.load %arg2[%c0_1, %c0_2] : memref<32x128xbf16, #tpu.memory_space<vmem>>, vector<32x128xbf16>
    %cst = arith.constant dense<0.000000e+00> : vector<8x128xf32>
    %3 = tpu.matmul %1, %2, %cst {dimension_numbers = #tpu.dot_dimension_numbers<[1], [0], [0], [1], [0, 0, 1, 1], [], []>} : vector<8x32xbf16>, vector<32x128xbf16>, vector<8x128xf32> -> vector<8x128xf32>
    %c0_3 = arith.constant 0 : index
    %c0_4 = arith.constant 0 : index
    %4 = vector.load %arg3[%c0_3, %c0_4] : memref<1x128xf32, #tpu.memory_space<vmem>>, vector<1x128xf32>
    %5 = vector.broadcast %4 : vector<1x128xf32> to vector<8x128xf32>
    %6 = arith.addf %3, %5 : vector<8x128xf32>
    %cst_5 = arith.constant 0.00999999977 : f32
    %7 = vector.broadcast %cst_5 : f32 to vector<8x128xf32>
    %8 = arith.mulf %7, %6 : vector<8x128xf32>
    %9 = arith.maximumf %6, %8 : vector<8x128xf32>
    %10 = arith.truncf %9 : vector<8x128xf32> to vector<8x128xbf16>
    %c0_6 = arith.constant 0 : index
    %c0_7 = arith.constant 0 : index
    %11 = vector.load %arg4[%c0_6, %c0_7] : memref<128x8xbf16, #tpu.memory_space<vmem>>, vector<128x8xbf16>
    %cst_8 = arith.constant dense<0.000000e+00> : vector<8x8xf32>
    %12 = tpu.matmul %10, %11, %cst_8 {dimension_numbers = #tpu.dot_dimension_numbers<[1], [0], [0], [1], [0, 0, 1, 1], [], []>} : vector<8x128xbf16>, vector<128x8xbf16>, vector<8x8xf32> -> vector<8x8xf32>
    %c0_9 = arith.constant 0 : index
    %c0_10 = arith.constant 0 : index
    %13 = vector.load %arg5[%c0_9, %c0_10] : memref<1x8xf32, #tpu.memory_space<vmem>>, vector<1x8xf32>
    %14 = vector.broadcast %13 : vector<1x8xf32> to vector<8x8xf32>
    %15 = arith.addf %12, %14 : vector<8x8xf32>
    %cst_11 = arith.constant 0.000000e+00 : f32
    %16 = vector.broadcast %cst_11 : f32 to vector<8x8xf32>
    %17 = arith.subf %16, %15 : vector<8x8xf32>
    %18 = math.exp %17 : vector<8x8xf32>
    %cst_12 = arith.constant 1.000000e+00 : f32
    %19 = vector.broadcast %cst_12 : f32 to vector<8x8xf32>
    %20 = arith.addf %19, %18 : vector<8x8xf32>
    %21 = tpu.reciprocal %20 {approx = true} : vector<8x8xf32> -> vector<8x8xf32>
    %c0_13 = arith.constant 0 : index
    %c0_14 = arith.constant 0 : index
    %22 = vector.load %arg6[%c0_13, %c0_14] : memref<8x8xf32, #tpu.memory_space<vmem>>, vector<8x8xf32>
    tpu.vector_store %arg6[%c0_13, %c0_14], %21 {strides = array<i32>} : memref<8x8xf32, #tpu.memory_space<vmem>>, vector<8x8xf32>,
    return
  }
  func.func @transform_0(%arg0: i32) -> (i32, i32) {
    %c0_i32 = arith.constant 0 : i32
    %c0_i32_0 = arith.constant 0 : i32
    return %arg0, %c0_i32 : i32, i32
  }
  func.func @transform_1(%arg0: i32) -> (i32, i32) {
    %c0_i32 = arith.constant 0 : i32
    %c0_i32_0 = arith.constant 0 : i32
    %c0_i32_1 = arith.constant 0 : i32
    return %c0_i32, %c0_i32_0 : i32, i32
  }
  func.func @transform_2(%arg0: i32) -> (i32, i32) {
    %c0_i32 = arith.constant 0 : i32
    %c0_i32_0 = arith.constant 0 : i32
    %c0_i32_1 = arith.constant 0 : i32
    return %c0_i32, %c0_i32_0 : i32, i32
  }
  func.func @transform_3(%arg0: i32) -> (i32, i32) {
    %c0_i32 = arith.constant 0 : i32
    %c0_i32_0 = arith.constant 0 : i32
    %c0_i32_1 = arith.constant 0 : i32
    return %c0_i32, %c0_i32_0 : i32, i32
  }
  func.func @transform_4(%arg0: i32) -> (i32, i32) {
    %c0_i32 = arith.constant 0 : i32
    %c0_i32_0 = arith.constant 0 : i32
    %c0_i32_1 = arith.constant 0 : i32
    return %c0_i32, %c0_i32_0 : i32, i32
  }
  func.func @transform_5(%arg0: i32) -> (i32, i32) {
    %c0_i32 = arith.constant 0 : i32
    %c0_i32_0 = arith.constant 0 : i32
    return %arg0, %c0_i32 : i32, i32
  }
}

</mosaic_0001>

<llo_original>
// kernel: tpu_custom_call.1
$region0: #{tpu_custom_call.1}
  #allocation0 [shape = 'u32[]', space=smem, size = 0x4, offset = 0x4, fixed_abs, tag = 'smem constant byte address 0x4 - core index']
  #allocation1 [shape = 'u32[144,128]{1,0:T(1,128)}', space=vmem, size = 0x12000, scoped, tag = 'internal scratch']
  %s0 = inlined_call_operand.vmem [shape: f32[8,32], index: 0, kind: input, shape index: {}]
  %s1 = inlined_call_operand.vmem [shape: bf16[32,128], index: 1, kind: input, shape index: {}]
  %s2 = inlined_call_operand.vmem [shape: f32[1,128], index: 2, kind: input, shape index: {}]
  %s3 = inlined_call_operand.vmem [shape: bf16[128,8], index: 3, kind: input, shape index: {}]
  %s4 = inlined_call_operand.vmem [shape: f32[1,8], index: 4, kind: input, shape index: {}]
  %s5 = inlined_call_operand.hbm [shape: f32[8,8], index: 5, kind: output, shape index: {}]
  %s6 = sld [smem:[#allocation0]]
  $region30: #{tpu_custom_call.1} parent=0
    _
  %s8 = ssub.s32 1, %s6
  %s9 = scalar_select 0, %s8, %s6
  $region1: #{tpu_custom_call.1} parent=0
    #allocation2 [shape = 'u8[4096]{0}', space=vmem, size = 0x1000, scoped, tag = 'output window, operand 0, single buffered']
    #allocation3 [shape = 's32[1]{0}', space=sflag, size = 0x4, scoped, tag = 'scoped memory for tpu_custom_call.1']
    %10 = vsyncpa [#allocation3], 0
    // Predicated region
    $region2: #{tpu_custom_call.1} parent=1 // pred_check
      _
    $region3: #{tpu_custom_call.1} parent=1 // pred_check_branch
      %12 = sbr.rel (0) target = $region5
    $region4: #{tpu_custom_call.1} parent=1 // pred_region
      _
    $region5: #{tpu_custom_call.1} parent=1 // pred_fallthru
      _
    // Predicated region
    $region6: #{tpu_custom_call.1} parent=1 // pred_check
      _
    $region7: #{tpu_custom_call.1} parent=1 // pred_check_branch
      %14 = sbr.rel (0) target = $region9
    $region8: #{tpu_custom_call.1} parent=1 // pred_region
      _
    $region9: #{tpu_custom_call.1} parent=1 // pred_fallthru
      _
    // Predicated region
    $region10: #{tpu_custom_call.1} parent=1 // pred_check
      _
    $region11: #{tpu_custom_call.1} parent=1 // pred_check_branch
      %16 = sbr.rel (0) target = $region13
    $region12: #{tpu_custom_call.1} parent=1 // pred_region
      _
    $region13: #{tpu_custom_call.1} parent=1 // pred_fallthru
      _
    // Predicated region
    $region14: #{tpu_custom_call.1} parent=1 // pred_check
      _
    $region15: #{tpu_custom_call.1} parent=1 // pred_check_branch
      %18 = sbr.rel (0) target = $region17
    $region16: #{tpu_custom_call.1} parent=1 // pred_region
      _
    $region17: #{tpu_custom_call.1} parent=1 // pred_fallthru
      _
    // Predicated region
    $region18: #{tpu_custom_call.1} parent=1 // pred_check
      _
    $region19: #{tpu_custom_call.1} parent=1 // pred_check_branch
      %20 = sbr.rel (0) target = $region21
    $region20: #{tpu_custom_call.1} parent=1 // pred_region
      _
    $region21: #{tpu_custom_call.1} parent=1 // pred_fallthru
      _
    %v22 = vld [vmem:[%s0] sm:$0xff]
    %v23 = vpack.c.bf16 %v22, %v22
    %v24 = vld [vmem:[%s1] sm:$0xf]
    %v25 = vld [vmem:[%s1 + $0x4] sm:$0xf]
    %v26 = vld [vmem:[%s1 + $0x8] sm:$0xf]
    %v27 = vld [vmem:[%s1 + $0xc] sm:$0xf]
    %v28 = vld [vmem:[%s2] sm:$0x1]
    %v30 = vlaneseq
    %v31 = vshrl.u32 %v30, 7
    %v32 = vsub.s32 0, %v31
    %v33 = vrot.slane %v28, %v32
    %v39 = vunpack.c.l.b16 %v24
    %v40 = vunpack.c.l.b16 %v25
    %v41 = vunpack.c.l.b16 %v26
    %v42 = vunpack.c.l.b16 %v27
    %v43 = vpack.c.b16 %v40, %v39
    %v44 = vpack.c.b16 %v42, %v41
    %vm47 = vcmask 261120
    %v49 = vsel %vm47, %v23, 0
    %51 = vmatprep.subr.bf16.mxu0 0
    %52 = vmatpush1.bf16.msra.mxu0 0
    %53 = vmatprep.subr.bf16.mxu0 0
    %54 = vmatpush1.bf16.msra.mxu0 0
    %55 = vmatprep.subr.bf16.mxu0 0
    %56 = vmatpush1.bf16.msra.mxu0 0
    %57 = vmatprep.subr.bf16.mxu0 0
    %58 = vmatpush1.bf16.msra.mxu0 0
    %59 = vmatprep.subr.bf16.mxu0 0
    %60 = vmatpush1.bf16.msra.mxu0 0
    %61 = vmatprep.subr.bf16.mxu0 0
    %62 = vmatpush1.bf16.msra.mxu0 0
    %63 = vmatprep.subr.bf16.mxu0 0
    %64 = vmatpush1.bf16.msra.mxu0 %v44
    %65 = vmatprep.subr.bf16.mxu0 0
    %66 = vmatpush1.bf16.msra.mxu0 %v43
    %67 = vmatprep.subr.bf16.mxu0 0
    %68 = vmatpush2.bf16.msra.mxu0 0
    %69 = vmatprep.subr.bf16.mxu0 0
    %70 = vmatpush2.bf16.msra.mxu0 0
    %71 = vmatprep.subr.bf16.mxu0 0
    %72 = vmatpush2.bf16.msra.mxu0 0
    %73 = vmatprep.subr.bf16.mxu0 0
    %74 = vmatpush2.bf16.msra.mxu0 0
    %75 = vmatprep.subr.bf16.mxu0 0
    %76 = vmatpush2.bf16.msra.mxu0 0
    %77 = vmatprep.subr.bf16.mxu0 0
    %78 = vmatpush2.bf16.msra.mxu0 0
    %79 = vmatprep.subr.bf16.mxu0 0
    %80 = vmatpush2.bf16.msra.mxu0 0
    %81 = vmatprep.subr.bf16.mxu0 0
    %82 = vmatpush2.bf16.msra.mxu0 0
    %83 = vmatprep.mubr.bf16.mxu0 0
    %84 = vmatmul.mubr.bf16.gmra.mxu0 %v49
    %v85 = vpop.f32.mrf.mxu0
    %v86 = vadd.f32 %v33, %v85
    %v87 = vpop.f32.mrf.mxu0
    %v88 = vpop.f32.mrf.mxu0
    %v89 = vpop.f32.mrf.mxu0
    %90 = vdwg.mxu0
    %v91 = vmul.f32 %v86, 0.01
    %v92 = vmax.f32 %v86, %v91
    %v93 = vpack.c.bf16 %v92, %v92
    %v94 = vld [vmem:[%s3] sm:$0xf]
    %v95 = vld [vmem:[%s3 + $0x4] sm:$0xf]
    %v96 = vld [vmem:[%s3 + $0x8] sm:$0xf]
    %v97 = vld [vmem:[%s3 + $0xc] sm:$0xf]
    %v98 = vld [vmem:[%s3 + $0x10] sm:$0xf]
    %v99 = vld [vmem:[%s3 + $0x14] sm:$0xf]
    %v100 = vld [vmem:[%s3 + $0x18] sm:$0xf]
    %v101 = vld [vmem:[%s3 + $0x1c] sm:$0xf]
    %v102 = vld [vmem:[%s3 + $0x20] sm:$0xf]
    %v103 = vld [vmem:[%s3 + $0x24] sm:$0xf]
    %v104 = vld [vmem:[%s3 + $0x28] sm:$0xf]
    %v105 = vld [vmem:[%s3 + $0x2c] sm:$0xf]
    %v106 = vld [vmem:[%s3 + $0x30] sm:$0xf]
    %v107 = vld [vmem:[%s3 + $0x34] sm:$0xf]
    %v108 = vld [vmem:[%s3 + $0x38] sm:$0xf]
    %v109 = vld [vmem:[%s3 + $0x3c] sm:$0xf]
    %v110 = vld [vmem:[%s4] sm:$0x1]
    %v112 = vlaneseq
    %v113 = vshrl.u32 %v112, 7
    %v114 = vsub.s32 0, %v113
    %v115 = vrot.slane %v110, %v114
    %v133 = vunpack.c.l.b16 %v94
    %v134 = vunpack.c.l.b16 %v95
    %v135 = vunpack.c.l.b16 %v96
    %v136 = vunpack.c.l.b16 %v97
    %v137 = vunpack.c.l.b16 %v98
    %v138 = vunpack.c.l.b16 %v99
    %v139 = vunpack.c.l.b16 %v100
    %v140 = vunpack.c.l.b16 %v101
    %v141 = vunpack.c.l.b16 %v102
    %v142 = vunpack.c.l.b16 %v103
    %v143 = vunpack.c.l.b16 %v104
    %v144 = vunpack.c.l.b16 %v105
    %v145 = vunpack.c.l.b16 %v106
    %v146 = vunpack.c.l.b16 %v107
    %v147 = vunpack.c.l.b16 %v108
    %v148 = vunpack.c.l.b16 %v109
    %v149 = vpack.c.b16 %v134, %v133
    %v150 = vpack.c.b16 %v136, %v135
    %v151 = vpack.c.b16 %v138, %v137
    %v152 = vpack.c.b16 %v140, %v139
    %v153 = vpack.c.b16 %v142, %v141
    %v154 = vpack.c.b16 %v144, %v143
    %v155 = vpack.c.b16 %v146, %v145
    %v156 = vpack.c.b16 %v148, %v147
    %165 = vmatprep.subr.bf16.mxu0 0
    %166 = vmatpush1.bf16.msra.mxu0 %v156
    %167 = vmatprep.subr.bf16.mxu0 0
    %168 = vmatpush1.bf16.msra.mxu0 %v155
    %169 = vmatprep.subr.bf16.mxu0 0
    %170 = vmatpush1.bf16.msra.mxu0 %v154
    %171 = vmatprep.subr.bf16.mxu0 0
    %172 = vmatpush1.bf16.msra.mxu0 %v153
    %173 = vmatprep.subr.bf16.mxu0 0
    %174 = vmatpush1.bf16.msra.mxu0 %v152
    %175 = vmatprep.subr.bf16.mxu0 0
    %176 = vmatpush1.bf16.msra.mxu0 %v151
    %177 = vmatprep.subr.bf16.mxu0 0
    %178 = vmatpush1.bf16.msra.mxu0 %v150
    %179 = vmatprep.subr.bf16.mxu0 0
    %180 = vmatpush1.bf16.msra.mxu0 %v149
    %181 = vmatprep.subr.bf16.mxu0 0
    %182 = vmatpush2.bf16.msra.mxu0 0
    %183 = vmatprep.subr.bf16.mxu0 0
    %184 = vmatpush2.bf16.msra.mxu0 0
    %185 = vmatprep.subr.bf16.mxu0 0
    %186 = vmatpush2.bf16.msra.mxu0 0
    %187 = vmatprep.subr.bf16.mxu0 0
    %188 = vmatpush2.bf16.msra.mxu0 0
    %189 = vmatprep.subr.bf16.mxu0 0
    %190 = vmatpush2.bf16.msra.mxu0 0
    %191 = vmatprep.subr.bf16.mxu0 0
    %192 = vmatpush2.bf16.msra.mxu0 0
    %193 = vmatprep.subr.bf16.mxu0 0
    %194 = vmatpush2.bf16.msra.mxu0 0
    %195 = vmatprep.subr.bf16.mxu0 0
    %196 = vmatpush2.bf16.msra.mxu0 0
    %197 = vmatprep.mubr.bf16.mxu0 0
    %198 = vmatmul.mubr.bf16.gmra.mxu0 %v93
    %v199 = vpop.f32.mrf.mxu0
    %v200 = vadd.f32 %v115, %v199
    %v201 = vpop.f32.mrf.mxu0
    %v202 = vpop.f32.mrf.mxu0
    %v203 = vpop.f32.mrf.mxu0
    %204 = vdwg.mxu0
    %v205 = vsub.f32 0.0, %v200
    %v206 = vmul.f32 %v205, 1.442695
    %v207 = vpow.pop %v206
    %v208 = vadd.f32 %v207, 1.0
    %v209 = vrcp.pop %v208
    %vm210 = vcmask 64512
    %211 = vst.msk [vmem:[#allocation2] sm:$0xff] %vm210, %v209
    // Predicated region
    $region22: #{tpu_custom_call.1} parent=1 // pred_check
      _
    $region23: #{tpu_custom_call.1} parent=1 // pred_check_branch
      %213 = sbr.rel (0) target = $region25
    $region24: #{tpu_custom_call.1} parent=1 // pred_region
      %s215 = ssub.s32 128, 128
      %216 = vsyncadd [#allocation3], %s215
      %s218 = sshll.u32 [#allocation2], 4
      %s219 = int_to_ptr.vmem [resolvable:$true] %s218
      %221 = dma.vmem_to_hbm [thread:$0]  %s219, 128, %s5, [#allocation3]
    $region25: #{tpu_custom_call.1} parent=1 // pred_fallthru
      _
    // Predicated region
    $region26: #{tpu_custom_call.1} parent=1 // pred_check
      _
    $region27: #{tpu_custom_call.1} parent=1 // pred_check_branch
      %223 = sbr.rel (0) target = $region29
    $region28: #{tpu_custom_call.1} parent=1 // pred_region
      %224 = dma.done [#allocation3], 128
    $region29: #{tpu_custom_call.1} parent=1 // pred_fallthru
      _
    %225 = vsyncpa [#allocation3], 1

</llo_original>
